<compile_context>
chip_gen: v7x
topology: tpu7x:2x2x1
jax: 0.10.0
libtpu: 0.0.40
codegen_flags: <defaults>
</compile_context>

<pallas_src>
import functools

import jax
import jax.numpy as jnp
import numpy as np
from jax import lax
from jax.experimental import pallas as pl
from jax.experimental.pallas import tpu as pltpu


def _mse_kernel(xr_ref, x_ref, out_ref, acc_ref, *, inv_f):
    # xr_ref: (G, tb, TF), x_ref: (tb, TF), out_ref: (G, tb), acc_ref: (G, tb) f32
    k = pl.program_id(1)

    @pl.when(k == 0)
    def _():
        acc_ref[...] = jnp.zeros_like(acc_ref)

    x = x_ref[...].astype(jnp.float32)                     # cast in-register
    diff = xr_ref[...].astype(jnp.float32) - x             # (G, tb, TF), x broadcast
    acc_ref[...] += jnp.sum(diff * diff, axis=2)           # partial sum over this F tile

    @pl.when(k == pl.num_programs(1) - 1)
    def _():
        out_ref[...] = acc_ref[...] * inv_f                # single 1/F scale at finalize


def _choose_tiles(G, B, F, itemsize, vmem_budget=20 * 1024 * 1024):
    """Pick (tb, tf) so double-buffered (G+1) input tiles fit the VMEM budget.

    Constraints: out block (G, tb) needs tb == B or tb % 128 == 0; input blocks
    need tf % 128 == 0 or tf == F.  Tiles always divide (B, F) exactly.
    """
    tb_opts = [t for t in (512, 256, 128) if B % t == 0] or [B]
    tf_opts = [t for t in (8192, 4096, 2048, 1024, 512, 256, 128) if F % t == 0] or [F]
    for tb in tb_opts:
        for tf in tf_opts:
            need = 2 * (G + 1) * tb * tf * itemsize        # 2 pipeline buffers per input
            if need <= vmem_budget:
                return tb, tf
    return tb_opts[-1], tf_opts[-1]


def per_sample_mse(xr_flat, x_flat, *, tb=None, tf=None):
    """L_mse[g, b] = mean_f (xr_flat[g, b, f] - x_flat[b, f])**2  via Pallas."""
    G, B, F = xr_flat.shape
    itemsize = jnp.dtype(xr_flat.dtype).itemsize
    tb_auto, tf_auto = _choose_tiles(G, B, F, itemsize)
    tb = tb_auto if tb is None else tb
    tf = tf_auto if tf is None else tf
    assert B % tb == 0 and F % tf == 0, "tile sizes must divide (B, F)"

    grid = (pl.cdiv(B, tb), pl.cdiv(F, tf))                # (batch tiles, F reduction)
    kernel = functools.partial(_mse_kernel, inv_f=np.float32(1.0 / F))

    return pl.pallas_call(
        kernel,
        out_shape=jax.ShapeDtypeStruct((G, B), jnp.float32),
        grid_spec=pltpu.PrefetchScalarGridSpec(
            num_scalar_prefetch=0,
            grid=grid,
            in_specs=[
                # all G group members per tile -> x is fetched from HBM only once
                pl.BlockSpec((G, tb, tf), lambda b, k: (0, b, k)),
                pl.BlockSpec((tb, tf), lambda b, k: (b, k)),
            ],
            # constant block index across k -> output stays resident (accumulator)
            out_specs=pl.BlockSpec((G, tb), lambda b, k: (0, b)),
            scratch_shapes=[pltpu.VMEM((G, tb), jnp.float32)],
        ),
        compiler_params=pltpu.CompilerParams(
            dimension_semantics=("parallel", "arbitrary"),
            vmem_limit_bytes=32 * 1024 * 1024,
        ),
    )(xr_flat, x_flat)


def in_co_teaching_agree_loss(xr, x, noise_rate=0.1, group=2, *, tb=None, tf=None):
    """JAX/Pallas port of InCoTeachingAgreeLoss.forward.

    xr: (group, B, C, H, W) reconstructions, x: (B, C, H, W) target.
    Returns a scalar loss (float32).
    """
    G = xr.shape[0]
    assert G == group
    B = x.shape[0]
    F = int(np.prod(x.shape[1:]))
    xr_flat = xr.reshape(G, B, F)          # no dtype upcast here: cast happens in-kernel
    x_flat = x.reshape(B, F)

    # hot path: per-sample MSE for every group member (Pallas)
    l_mse = per_sample_mse(xr_flat, x_flat, tb=tb, tf=tf)   # (G, B) f32

    rem_idx = int(B * (1.0 - noise_rate))
    # TODO(synk): the top-k "agree" selection and tiny gather/mean epilogue over a
    # (B,)-sized vector stay in plain JAX glue; no Pallas kernel is warranted.
    _, agrees = lax.top_k(-l_mse[0], rem_idx)               # indices of smallest losses
    # NOTE: the reference intersects `agrees` with the FULL argsort of the other
    # group members (each a permutation of 0..B-1), a set-wise no-op; since only
    # the mean over `agrees` is used, selection order is irrelevant.
    return jnp.sum(jnp.mean(l_mse[:, agrees], axis=1))


def _reference(xr, x, noise_rate=0.1, group=2):
    """Pure NumPy re-implementation of the PyTorch module (for verification)."""
    xr = np.asarray(xr, dtype=np.float32)
    x = np.asarray(x, dtype=np.float32)
    l_mse, idxsorted = [], []
    for ixr in xr:
        lmse = ((ixr - x) ** 2).mean(axis=(1, 2, 3))
        l_mse.append(lmse)
        idxsorted.append(np.argsort(lmse))
    rem_idx = int(x.shape[0] * (1.0 - noise_rate))
    agrees = idxsorted[0][:rem_idx]
    for i in range(1, group):
        agrees = np.intersect1d(agrees, idxsorted[i])
    loss = 0.0
    for i in range(group):
        loss += l_mse[i][agrees].mean()
    return float(loss)


if __name__ == "__main__":
    key = jax.random.PRNGKey(0)
    k1, k2 = jax.random.split(key)
    G, B, C, H, W = 2, 8, 4, 16, 16
    x = jax.random.normal(k1, (B, C, H, W), dtype=jnp.float32)
    xr = jax.random.normal(k2, (G, B, C, H, W), dtype=jnp.float32)

    ref = _reference(np.asarray(xr), np.asarray(x), noise_rate=0.1, group=G)

    # 1) default tiling (single F tile at this toy size)
    loss = jax.block_until_ready(
        in_co_teaching_agree_loss(xr, x, noise_rate=0.1, group=G))
    assert abs(float(loss) - ref) <= 1e-3 * max(1.0, abs(ref)), (float(loss), ref)

    # 2) forced F tiling (TF=256 -> 4 reduction steps) exercises the accumulator path
    loss_tiled = jax.block_until_ready(
        in_co_teaching_agree_loss(xr, x, noise_rate=0.1, group=G, tf=256))
    assert abs(float(loss_tiled) - ref) <= 1e-3 * max(1.0, abs(ref)), (float(loss_tiled), ref)

    # 3) bf16 inputs: widen to f32 happens inside the kernel, accumulation in f32
    xr_bf = xr.astype(jnp.bfloat16)
    x_bf = x.astype(jnp.bfloat16)
    loss_bf = jax.block_until_ready(
        in_co_teaching_agree_loss(xr_bf, x_bf, noise_rate=0.1, group=G, tf=256))
    ref_bf = _reference(np.asarray(xr_bf.astype(jnp.float32)),
                        np.asarray(x_bf.astype(jnp.float32)),
                        noise_rate=0.1, group=G)
    assert abs(float(loss_bf) - ref_bf) <= 1e-3 * max(1.0, abs(ref_bf)), (float(loss_bf), ref_bf)

    print("KERNEL_OK")
</pallas_src>

<mosaic_0001>
module attributes {stable_mosaic.version = 11 : i64} {
  func.func @_mse_kernel(%arg0: i32, %arg1: i32, %arg2: memref<2x8x1024xf32, #tpu.memory_space<vmem>>, %arg3: memref<8x1024xf32, #tpu.memory_space<vmem>>, %arg4: memref<2x8xf32, #tpu.memory_space<vmem>>, %arg5: memref<2x8xf32, #tpu.memory_space<vmem>>) attributes {dimension_semantics = [#tpu.dimension_semantics<parallel>, #tpu.dimension_semantics<arbitrary>], iteration_bounds = array<i64: 1, 1>, scalar_prefetch = 0 : i64, scratch_operands = 1 : i64, tpu.core_type = #tpu.core_type<tc>, window_params = [{transform_indices = @transform_0, window_bounds = array<i64: 2, 8, 1024>}, {transform_indices = @transform_1, window_bounds = array<i64: 8, 1024>}, {transform_indices = @transform_2, window_bounds = array<i64: 2, 8>}]} {
    %c0_i32 = arith.constant 0 : i32
    %0 = arith.cmpi eq, %arg1, %c0_i32 : i32
    %1 = arith.extui %0 : i1 to i32
    %c0_i32_0 = arith.constant 0 : i32
    %2 = arith.cmpi ne, %1, %c0_i32_0 : i32
    scf.if %2 {
      %cst_11 = arith.constant 0.000000e+00 : f32
      %16 = vector.broadcast %cst_11 : f32 to vector<2x8xf32>
      %c0_12 = arith.constant 0 : index
      %c0_13 = arith.constant 0 : index
      %17 = vector.load %arg5[%c0_12, %c0_13] : memref<2x8xf32, #tpu.memory_space<vmem>>, vector<2x8xf32>
      tpu.vector_store %arg5[%c0_12, %c0_13], %16 {strides = array<i32>} : memref<2x8xf32, #tpu.memory_space<vmem>>, vector<2x8xf32>,
    } else {
    }
    %c0 = arith.constant 0 : index
    %c0_1 = arith.constant 0 : index
    %3 = vector.load %arg3[%c0, %c0_1] : memref<8x1024xf32, #tpu.memory_space<vmem>>, vector<8x1024xf32>
    %c0_2 = arith.constant 0 : index
    %c0_3 = arith.constant 0 : index
    %c0_4 = arith.constant 0 : index
    %4 = vector.load %arg2[%c0_2, %c0_3, %c0_4] : memref<2x8x1024xf32, #tpu.memory_space<vmem>>, vector<2x8x1024xf32>
    %5 = vector.shape_cast %3 : vector<8x1024xf32> to vector<1x8x1024xf32>
    %6 = vector.broadcast %5 : vector<1x8x1024xf32> to vector<2x8x1024xf32>
    %7 = arith.subf %4, %6 : vector<2x8x1024xf32>
    %c0_5 = arith.constant 0 : index
    %c0_6 = arith.constant 0 : index
    %8 = vector.load %arg5[%c0_5, %c0_6] : memref<2x8xf32, #tpu.memory_space<vmem>>, vector<2x8xf32>
    %9 = arith.mulf %7, %7 : vector<2x8x1024xf32>
    %cst = arith.constant dense<0.000000e+00> : vector<2x8xf32>
    %10 = vector.multi_reduction <add>, %9, %cst [2] : vector<2x8x1024xf32> to vector<2x8xf32>
    %11 = arith.addf %8, %10 : vector<2x8xf32>
    %c0_7 = arith.constant 0 : index
    %c0_8 = arith.constant 0 : index
    %12 = vector.load %arg5[%c0_7, %c0_8] : memref<2x8xf32, #tpu.memory_space<vmem>>, vector<2x8xf32>
    tpu.vector_store %arg5[%c0_7, %c0_8], %11 {strides = array<i32>} : memref<2x8xf32, #tpu.memory_space<vmem>>, vector<2x8xf32>,
    %c0_i32_9 = arith.constant 0 : i32
    %13 = arith.cmpi eq, %arg1, %c0_i32_9 : i32
    %14 = arith.extui %13 : i1 to i32
    %c0_i32_10 = arith.constant 0 : i32
    %15 = arith.cmpi ne, %14, %c0_i32_10 : i32
    scf.if %15 {
      %c0_11 = arith.constant 0 : index
      %c0_12 = arith.constant 0 : index
      %16 = vector.load %arg5[%c0_11, %c0_12] : memref<2x8xf32, #tpu.memory_space<vmem>>, vector<2x8xf32>
      %cst_13 = arith.constant 9.765625E-4 : f32
      %17 = vector.broadcast %cst_13 : f32 to vector<2x8xf32>
      %18 = arith.mulf %16, %17 : vector<2x8xf32>
      %c0_14 = arith.constant 0 : index
      %c0_15 = arith.constant 0 : index
      %19 = vector.load %arg4[%c0_14, %c0_15] : memref<2x8xf32, #tpu.memory_space<vmem>>, vector<2x8xf32>
      tpu.vector_store %arg4[%c0_14, %c0_15], %18 {strides = array<i32>} : memref<2x8xf32, #tpu.memory_space<vmem>>, vector<2x8xf32>,
    } else {
    }
    return
  }
  func.func @transform_0(%arg0: i32, %arg1: i32) -> (i32, i32, i32) {
    %c0_i32 = arith.constant 0 : i32
    %c0_i32_0 = arith.constant 0 : i32
    return %c0_i32, %arg0, %arg1 : i32, i32, i32
  }
  func.func @transform_1(%arg0: i32, %arg1: i32) -> (i32, i32) {
    %c0_i32 = arith.constant 0 : i32
    return %arg0, %arg1 : i32, i32
  }
  func.func @transform_2(%arg0: i32, %arg1: i32) -> (i32, i32) {
    %c0_i32 = arith.constant 0 : i32
    %c0_i32_0 = arith.constant 0 : i32
    return %c0_i32, %arg0 : i32, i32
  }
}

</mosaic_0001>

<llo_original>
// kernel: tpu_custom_call.1
$region0: #{tpu_custom_call.1}
  #allocation0 [shape = 'u32[]', space=smem, size = 0x4, offset = 0x4, fixed_abs, tag = 'smem constant byte address 0x4 - core index']
  #allocation1 [shape = 'u32[144,128]{1,0:T(1,128)}', space=vmem, size = 0x12000, scoped, tag = 'internal scratch']
  #allocation2 [shape = 'f32[2,8]{1,0:T(2,128)}', space=vmem, size = 0x400, scoped, tag = 'scratch operand']
  %s0 = inlined_call_operand.hbm [shape: f32[2,8,1024], index: 0, kind: input, shape index: {}]
  %s1 = inlined_call_operand.hbm [shape: f32[8,1024], index: 1, kind: input, shape index: {}]
  %s2 = inlined_call_operand.hbm [shape: f32[2,8], index: 2, kind: output, shape index: {}]
  %s3 = sld [smem:[#allocation0]]
  $region34: #{tpu_custom_call.1} parent=0
    _
  %s5 = ssub.s32 1, %s3
  %s6 = scalar_select 0, %s5, %s3
  $region1: #{tpu_custom_call.1} parent=0
    #allocation3 [shape = 'u8[65536]{0}', space=vmem, size = 0x10000, scoped, tag = 'input window, operand 0, single buffered']
    #allocation4 [shape = 's32[1]{0}', space=sflag, size = 0x4, scoped, tag = 'scoped memory for tpu_custom_call.1']
    #allocation5 [shape = 's32[1]{0}', space=sflag, size = 0x4, scoped, tag = 'scoped memory for tpu_custom_call.1']
    #allocation6 [shape = 'u8[32768]{0}', space=vmem, size = 0x8000, scoped, tag = 'input window, operand 1, single buffered']
    #allocation7 [shape = 's32[1]{0}', space=sflag, size = 0x4, scoped, tag = 'scoped memory for tpu_custom_call.1']
    #allocation8 [shape = 'u8[1024]{0}', space=vmem, size = 0x400, scoped, tag = 'output window, operand 0, single buffered']
    %7 = vsyncpa [#allocation4], 0
    %8 = vsyncpa [#allocation7], 0
    %9 = vsyncpa [#allocation5], 0
    // Predicated region
    $region2: #{tpu_custom_call.1} parent=1 // pred_check
      _
    $region3: #{tpu_custom_call.1} parent=1 // pred_check_branch
      %11 = sbr.rel (0) target = $region5
    $region4: #{tpu_custom_call.1} parent=1 // pred_region
      %s13 = ssub.s32 2048, 2048
      %14 = vsyncadd [#allocation4], %s13
      %s15 = sshll.u32 [#allocation3], 4
      %s16 = int_to_ptr.vmem [resolvable:$true] %s15
      %21 = dma.hbm_to_vmem [thread:$0]  %s0, 2048, %s16, [#allocation4], 1024, 1024, 64
    $region5: #{tpu_custom_call.1} parent=1 // pred_fallthru
      _
    // Predicated region
    $region6: #{tpu_custom_call.1} parent=1 // pred_check
      _
    $region7: #{tpu_custom_call.1} parent=1 // pred_check_branch
      %23 = sbr.rel (0) target = $region9
    $region8: #{tpu_custom_call.1} parent=1 // pred_region
      %s25 = ssub.s32 1024, 1024
      %26 = vsyncadd [#allocation7], %s25
      %s28 = sshll.u32 [#allocation6], 4
      %s29 = int_to_ptr.vmem [resolvable:$true] %s28
      %31 = dma.hbm_to_vmem [thread:$0]  %s1, 1024, %s29, [#allocation7]
    $region9: #{tpu_custom_call.1} parent=1 // pred_fallthru
      _
    // Predicated region
    $region10: #{tpu_custom_call.1} parent=1 // pred_check
      _
    $region11: #{tpu_custom_call.1} parent=1 // pred_check_branch
      %33 = sbr.rel (0) target = $region13
    $region12: #{tpu_custom_call.1} parent=1 // pred_region
      %34 = dma.done [#allocation4], 2048
    $region13: #{tpu_custom_call.1} parent=1 // pred_fallthru
      _
    // Predicated region
    $region14: #{tpu_custom_call.1} parent=1 // pred_check
      _
    $region15: #{tpu_custom_call.1} parent=1 // pred_check_branch
      %36 = sbr.rel (0) target = $region17
    $region16: #{tpu_custom_call.1} parent=1 // pred_region
      %37 = dma.done [#allocation7], 1024
    $region17: #{tpu_custom_call.1} parent=1 // pred_fallthru
      _
    %p38 = scmp.eq.s32.totalorder 0, 0
    // Predicated region
    $region18: #{tpu_custom_call.1} parent=1 // pred_check
      %p39 = pneg %p38
    $region19: #{tpu_custom_call.1} parent=1 // pred_check_branch
      %41 = sbr.rel (%p39) target = $region21
    $region20: #{tpu_custom_call.1} parent=1 // pred_region
      %vm42 = vcmask 58368
      %43 = vst.msk [vmem:[#allocation2] sm:$0x3] %vm42, 0.0
    $region21: #{tpu_custom_call.1} parent=1 // pred_fallthru
      _
    %v44 = vld [vmem:[#allocation6] sm:$0xff]
    %v45 = vld [vmem:[#allocation6 + $0x8] sm:$0xff]
    %v46 = vld [vmem:[#allocation6 + $0x10] sm:$0xff]
    %v47 = vld [vmem:[#allocation6 + $0x18] sm:$0xff]
    %v48 = vld [vmem:[#allocation6 + $0x20] sm:$0xff]
    %v49 = vld [vmem:[#allocation6 + $0x28] sm:$0xff]
    %v50 = vld [vmem:[#allocation6 + $0x30] sm:$0xff]
    %v51 = vld [vmem:[#allocation6 + $0x38] sm:$0xff]
    %v52 = vld [vmem:[#allocation3] sm:$0xff]
    %v53 = vld [vmem:[#allocation3 + $0x8] sm:$0xff]
    %v54 = vld [vmem:[#allocation3 + $0x10] sm:$0xff]
    %v55 = vld [vmem:[#allocation3 + $0x18] sm:$0xff]
    %v56 = vld [vmem:[#allocation3 + $0x20] sm:$0xff]
    %v57 = vld [vmem:[#allocation3 + $0x28] sm:$0xff]
    %v58 = vld [vmem:[#allocation3 + $0x30] sm:$0xff]
    %v59 = vld [vmem:[#allocation3 + $0x38] sm:$0xff]
    %v60 = vld [vmem:[#allocation3 + $0x40] sm:$0xff]
    %v61 = vld [vmem:[#allocation3 + $0x48] sm:$0xff]
    %v62 = vld [vmem:[#allocation3 + $0x50] sm:$0xff]
    %v63 = vld [vmem:[#allocation3 + $0x58] sm:$0xff]
    %v64 = vld [vmem:[#allocation3 + $0x60] sm:$0xff]
    %v65 = vld [vmem:[#allocation3 + $0x68] sm:$0xff]
    %v66 = vld [vmem:[#allocation3 + $0x70] sm:$0xff]
    %v67 = vld [vmem:[#allocation3 + $0x78] sm:$0xff]
    %v68 = vsub.f32 %v52, %v44
    %v69 = vsub.f32 %v53, %v45
    %v70 = vsub.f32 %v54, %v46
    %v71 = vsub.f32 %v55, %v47
    %v72 = vsub.f32 %v56, %v48
    %v73 = vsub.f32 %v57, %v49
    %v74 = vsub.f32 %v58, %v50
    %v75 = vsub.f32 %v59, %v51
    %v76 = vsub.f32 %v60, %v44
    %v77 = vsub.f32 %v61, %v45
    %v78 = vsub.f32 %v62, %v46
    %v79 = vsub.f32 %v63, %v47
    %v80 = vsub.f32 %v64, %v48
    %v81 = vsub.f32 %v65, %v49
    %v82 = vsub.f32 %v66, %v50
    %v83 = vsub.f32 %v67, %v51
    %v84 = vld [vmem:[#allocation2] sm:$0x3]
    %v85 = vmul.f32 %v68, %v68
    %v86 = vmul.f32 %v69, %v69
    %v87 = vmul.f32 %v70, %v70
    %v88 = vmul.f32 %v71, %v71
    %v89 = vmul.f32 %v72, %v72
    %v90 = vmul.f32 %v73, %v73
    %v91 = vmul.f32 %v74, %v74
    %v92 = vmul.f32 %v75, %v75
    %v93 = vmul.f32 %v76, %v76
    %v94 = vmul.f32 %v77, %v77
    %v95 = vmul.f32 %v78, %v78
    %v96 = vmul.f32 %v79, %v79
    %v97 = vmul.f32 %v80, %v80
    %v98 = vmul.f32 %v81, %v81
    %v99 = vmul.f32 %v82, %v82
    %v100 = vmul.f32 %v83, %v83
    %v101 = vadd.f32 %v85, %v86
    %v102 = vadd.f32 %v101, %v87
    %v103 = vadd.f32 %v102, %v88
    %v104 = vadd.f32 %v103, %v89
    %v105 = vadd.f32 %v104, %v90
    %v106 = vadd.f32 %v105, %v91
    %v107 = vadd.f32 %v106, %v92
    %108 = vadd.xlane.f32.xlu0 %v107
    %v109 = vpop.xlane.xlu0 %108
    %v110 = vadd.f32 %v93, %v94
    %v111 = vadd.f32 %v110, %v95
    %v112 = vadd.f32 %v111, %v96
    %v113 = vadd.f32 %v112, %v97
    %v114 = vadd.f32 %v113, %v98
    %v115 = vadd.f32 %v114, %v99
    %v116 = vadd.f32 %v115, %v100
    %117 = vadd.xlane.f32.xlu0 %v116
    %v118 = vpop.xlane.xlu0 %117
    %v121 = vlaneseq
    %v122 = vand.u32 %v121, 127
    %v123 = vlaneseq
    %v124 = vshrl.u32 %v123, 7
    %v125 = vsub.s32 %v122, %v124
    %v126 = vrot.slane %v109, %v125
    %v127 = vlaneseq
    %v128 = vshrl.u32 %v127, 7
    %v129 = vsub.s32 %v122, %v128
    %v130 = vrot.slane %v118, %v129
    %vm131 = vcmask 1041409
    %v132 = vsel %vm131, %v130, %v126
    %v134 = vadd.f32 %v84, %v132
    %vm135 = vcmask 58368
    %136 = vst.msk [vmem:[#allocation2] sm:$0x3] %vm135, %v134
    // Predicated region
    $region22: #{tpu_custom_call.1} parent=1 // pred_check
      %p137 = pneg %p38
    $region23: #{tpu_custom_call.1} parent=1 // pred_check_branch
      %139 = sbr.rel (%p137) target = $region25
    $region24: #{tpu_custom_call.1} parent=1 // pred_region
      %v140 = vld [vmem:[#allocation2] sm:$0x3]
      %v141 = vmul.f32 %v140, 0.0009765625
      %142 = vst.msk [vmem:[#allocation8] sm:$0x3] %vm135, %v141
    $region25: #{tpu_custom_call.1} parent=1 // pred_fallthru
      _
    // Predicated region
    $region26: #{tpu_custom_call.1} parent=1 // pred_check
      _
    $region27: #{tpu_custom_call.1} parent=1 // pred_check_branch
      %144 = sbr.rel (0) target = $region29
    $region28: #{tpu_custom_call.1} parent=1 // pred_region
      %s146 = ssub.s32 32, 32
      %147 = vsyncadd [#allocation5], %s146
      %s149 = sshll.u32 [#allocation8], 4
      %s150 = int_to_ptr.vmem [resolvable:$true] %s149
      %152 = dma.vmem_to_hbm [thread:$0]  %s150, 32, %s2, [#allocation5]
    $region29: #{tpu_custom_call.1} parent=1 // pred_fallthru
      _
    // Predicated region
    $region30: #{tpu_custom_call.1} parent=1 // pred_check
      _
    $region31: #{tpu_custom_call.1} parent=1 // pred_check_branch
      %154 = sbr.rel (0) target = $region33
    $region32: #{tpu_custom_call.1} parent=1 // pred_region
      %155 = dma.done [#allocation5], 32
    $region33: #{tpu_custom_call.1} parent=1 // pred_fallthru
      _
    %156 = vsyncpa [#allocation4], 1
    %157 = vsyncpa [#allocation7], 1
    %158 = vsyncpa [#allocation5], 1

</llo_original>
